<compile_context>
chip_gen: v7x
topology: tpu7x:2x2x1
jax: 0.10.0
libtpu: 0.0.40
codegen_flags: <defaults>
</compile_context>

<pallas_src>
import jax
import jax.numpy as jnp
from jax.experimental import pallas as pl
from jax.experimental.pallas import tpu as pltpu


# ---------------------------------------------------------------------------
# Kernel: out = x * mask, mask (1, F) broadcast over the batch rows.
# The mask arrives pre-clipped / pre-cast from the wrapper.
# ---------------------------------------------------------------------------
def _vdrop_kernel(x_ref, m_ref, o_ref):
    o_ref[...] = (x_ref[...] * m_ref[...]).astype(o_ref.dtype)


# ---------------------------------------------------------------------------
# Tiled pallas_call wrapper
# ---------------------------------------------------------------------------
_LANE = 128
_TARGET_TILE_BYTES = 2 * 1024 * 1024     # ~2 MiB per buffer (roofline-saturating)
_MIN_GRID_STEPS = 4                      # >= 2 steps per TC on v7x megacore


def _round_up(x, m):
    return ((x + m - 1) // m) * m


def _sublane(dtype):
    itemsize = jnp.dtype(dtype).itemsize
    return max(8, 32 // itemsize)        # 8 for f32, 16 for bf16, 32 for int8


def _pick_tile_rows(n_rows, row_bytes, sub):
    # Largest sublane multiple whose buffer fits the per-buffer budget.
    target_rows = max(sub, (_TARGET_TILE_BYTES // max(row_bytes, 1)) // sub * sub)
    steps = pl.cdiv(n_rows, target_rows)
    if n_rows >= _MIN_GRID_STEPS * sub:  # enough rows to split across steps/cores
        steps = max(steps, _MIN_GRID_STEPS)
    tile_rows = _round_up(pl.cdiv(n_rows, steps), sub)
    if tile_rows >= n_rows:
        tile_rows = n_rows               # single full-extent block (always legal)
    return tile_rows


def _masked_scale(x2, mask_f, tile_rows=None):
    """out[i, j] = x2[i, j] * mask_f[j], batch-tiled, no wrapper padding."""
    n, f = x2.shape
    itemsize = jnp.dtype(x2.dtype).itemsize
    sub = _sublane(x2.dtype)

    # Lane-fold small feature counts: pack (128 // f) batch rows per lane group.
    folded = False
    if f < _LANE and _LANE % f == 0 and n % (_LANE // f) == 0 and n >= (_LANE // f):
        fold = _LANE // f
        x_k = x2.reshape(n // fold, _LANE)
        m_k = jnp.tile(mask_f.reshape(-1), fold).reshape(1, _LANE)
        folded = True
    else:
        x_k = x2
        m_k = mask_f.reshape(1, f)

    n_rows, f_eff = x_k.shape

    if tile_rows is None:
        tile_rows = _pick_tile_rows(n_rows, f_eff * itemsize, sub)
    else:
        tile_rows = max(1, int(tile_rows))
        if tile_rows < n_rows:
            tile_rows = max(sub, (tile_rows // sub) * sub)
        else:
            tile_rows = n_rows

    grid = (pl.cdiv(n_rows, tile_rows),)

    out = pl.pallas_call(
        _vdrop_kernel,
        out_shape=jax.ShapeDtypeStruct((n_rows, f_eff), x2.dtype),
        grid=grid,
        in_specs=[
            pl.BlockSpec((tile_rows, f_eff), lambda i: (i, 0)),   # x tile
            pl.BlockSpec((1, f_eff), lambda i: (0, 0)),           # mask, resident
        ],
        out_specs=pl.BlockSpec((tile_rows, f_eff), lambda i: (i, 0)),
        compiler_params=pltpu.CompilerParams(
            dimension_semantics=("parallel",),                    # megacore on v7x
            vmem_limit_bytes=32 * 1024 * 1024),                   # explicit, v5e-safe
        cost_estimate=pl.CostEstimate(
            flops=int(n_rows) * int(f_eff),
            transcendentals=0,
            bytes_accessed=int(2 * n_rows * f_eff * itemsize
                               + f_eff * jnp.dtype(m_k.dtype).itemsize)),
    )(x_k, m_k)

    if folded:
        out = out.reshape(n, f)
    return out


def variational_dropout(x, p, mode, seed=0, tile_rows=None):
    """Pallas implementation of VariationalDropout.forward."""
    x2 = jnp.squeeze(x)                  # glue: matches torch input.squeeze()
    if x2.ndim == 1:                     # fully-squeezed input: torch broadcast
        x2 = x2.reshape(1, -1)           # against (1, F) mask yields (1, F)
    assert x2.ndim == 2, "forward expects a 2D (batch, features) tensor after squeeze"
    _, f = x2.shape

    p_f32 = jnp.asarray(p, dtype=jnp.float32).reshape(-1)
    assert p_f32.shape[0] == f, "p must have one retain probability per feature"

    probs = jnp.clip(p_f32, 0.0, 1.0)    # clamp hoisted out of the kernel
    if mode == "deterministic":
        # Keep retain probabilities in f32 (no quantization of p).
        mask = probs
    elif mode == "stochastic":
        # Drawn once, shared by every row and every batch tile (exact PyTorch
        # `torch.bernoulli(clamp(p,0,1)).view(1, F)` semantics). 0/1 is exact
        # in x's dtype, so cast once here for native-dtype compute in-kernel.
        mask = jax.random.bernoulli(
            jax.random.PRNGKey(seed), probs).astype(x2.dtype)
    else:
        raise Exception("Check mode: stochastic or deterministic only")

    return _masked_scale(x2, mask, tile_rows=tile_rows)


# ---------------------------------------------------------------------------
# Demo / correctness checks
# ---------------------------------------------------------------------------
if __name__ == "__main__":
    key = jax.random.PRNGKey(0)
    kx, kp, kx2, kx3, kp2 = jax.random.split(key, 5)

    # --- small shape (hid_dim=32, like the Graphsage dropout on conv1 output)
    batch, features = 8, 32
    x = jax.random.normal(kx, (batch, features), dtype=jnp.float32)
    # retain probabilities; outside [0,1] to exercise the clamp
    p = jax.random.uniform(kp, (features,), minval=-0.2, maxval=1.2,
                           dtype=jnp.float32)

    out_det = jax.block_until_ready(variational_dropout(x, p, "deterministic"))
    ref_det = x * jnp.clip(p, 0.0, 1.0)[None, :]
    assert out_det.shape == (batch, features)
    assert jnp.allclose(out_det, ref_det, atol=1e-6), "deterministic mismatch"

    out_sto = jax.block_until_ready(variational_dropout(x, p, "stochastic", seed=123))
    is_zero = out_sto == 0.0
    is_copy = jnp.abs(out_sto - x) < 1e-6
    assert bool(jnp.all(is_zero | is_copy)), "stochastic output is not a 0/1 mask of x"
    # columns with p >= 1 must always be kept, p <= 0 always dropped
    assert bool(jnp.all(jnp.where(p >= 1.0, is_copy.all(axis=0), True)))
    assert bool(jnp.all(jnp.where(p <= 0.0, is_zero.all(axis=0), True)))

    # --- larger small-F case: exercises lane-folding + multi-step grid
    n_fold, f_fold = 640, 32
    xf = jax.random.normal(kx3, (n_fold, f_fold), dtype=jnp.float32)
    pf = jax.random.uniform(kp, (f_fold,), minval=-0.2, maxval=1.2,
                            dtype=jnp.float32)
    out_fold = jax.block_until_ready(variational_dropout(xf, pf, "deterministic"))
    ref_fold = xf * jnp.clip(pf, 0.0, 1.0)[None, :]
    assert out_fold.shape == (n_fold, f_fold)
    assert jnp.allclose(out_fold, ref_fold, atol=1e-6), "lane-folded mismatch"

    out_fold_s = jax.block_until_ready(
        variational_dropout(xf, pf, "stochastic", seed=7))
    zf = out_fold_s == 0.0
    cf = jnp.abs(out_fold_s - xf) < 1e-6
    # every column fully kept or fully dropped -> mask shared across all tiles
    assert bool(jnp.all(zf.all(axis=0) | cf.all(axis=0))), "mask not shared across tiles"

    # --- ragged shape that does not lane-fold: full-extent F block, partial
    #     last batch block, multi-step grid
    n_big, f_big = 300, 200
    xb = jax.random.normal(kx2, (n_big, f_big), dtype=jnp.float32)
    pb = jax.random.uniform(kp2, (f_big,), minval=-0.2, maxval=1.2,
                            dtype=jnp.float32)
    out_big = jax.block_until_ready(variational_dropout(xb, pb, "deterministic"))
    ref_big = xb * jnp.clip(pb, 0.0, 1.0)[None, :]
    assert out_big.shape == (n_big, f_big)
    assert jnp.allclose(out_big, ref_big, atol=1e-6), "ragged deterministic mismatch"

    print("KERNEL_OK")
</pallas_src>

<mosaic_0001>
module attributes {stable_mosaic.version = 11 : i64} {
  func.func @_vdrop_kernel(%arg0: i32, %arg1: memref<2x128xf32, #tpu.memory_space<vmem>>, %arg2: memref<1x128xf32, #tpu.memory_space<vmem>>, %arg3: memref<2x128xf32, #tpu.memory_space<vmem>>) attributes {dimension_semantics = [#tpu.dimension_semantics<parallel>], iteration_bounds = array<i64: 1>, scalar_prefetch = 0 : i64, scratch_operands = 0 : i64, tpu.core_type = #tpu.core_type<tc>, window_params = [{transform_indices = @transform_0, window_bounds = array<i64: 2, 128>}, {pipeline_mode = #tpu.pipeline_mode<synchronous>, transform_indices = @transform_1, window_bounds = array<i64: 1, 128>}, {transform_indices = @transform_2, window_bounds = array<i64: 2, 128>}]} {
    %c0 = arith.constant 0 : index
    %c0_0 = arith.constant 0 : index
    %0 = vector.load %arg1[%c0, %c0_0] : memref<2x128xf32, #tpu.memory_space<vmem>>, vector<2x128xf32>
    %c0_1 = arith.constant 0 : index
    %c0_2 = arith.constant 0 : index
    %1 = vector.load %arg2[%c0_1, %c0_2] : memref<1x128xf32, #tpu.memory_space<vmem>>, vector<1x128xf32>
    %2 = vector.broadcast %1 : vector<1x128xf32> to vector<2x128xf32>
    %3 = arith.mulf %0, %2 : vector<2x128xf32>
    %c0_3 = arith.constant 0 : index
    %c0_4 = arith.constant 0 : index
    %4 = vector.load %arg3[%c0_3, %c0_4] : memref<2x128xf32, #tpu.memory_space<vmem>>, vector<2x128xf32>
    tpu.vector_store %arg3[%c0_3, %c0_4], %3 {strides = array<i32>} : memref<2x128xf32, #tpu.memory_space<vmem>>, vector<2x128xf32>,
    return
  }
  func.func @transform_0(%arg0: i32) -> (i32, i32) {
    %c0_i32 = arith.constant 0 : i32
    %c0_i32_0 = arith.constant 0 : i32
    return %arg0, %c0_i32 : i32, i32
  }
  func.func @transform_1(%arg0: i32) -> (i32, i32) {
    %c0_i32 = arith.constant 0 : i32
    %c0_i32_0 = arith.constant 0 : i32
    %c0_i32_1 = arith.constant 0 : i32
    return %c0_i32, %c0_i32_0 : i32, i32
  }
  func.func @transform_2(%arg0: i32) -> (i32, i32) {
    %c0_i32 = arith.constant 0 : i32
    %c0_i32_0 = arith.constant 0 : i32
    return %arg0, %c0_i32 : i32, i32
  }
}

</mosaic_0001>

<llo_original>
// kernel: tpu_custom_call.1
$region0: #{tpu_custom_call.1}
  #allocation0 [shape = 'u32[]', space=smem, size = 0x4, offset = 0x4, fixed_abs, tag = 'smem constant byte address 0x4 - core index']
  #allocation1 [shape = 'u32[144,128]{1,0:T(1,128)}', space=vmem, size = 0x12000, scoped, tag = 'internal scratch']
  %s0 = inlined_call_operand.hbm [shape: f32[2,128], index: 0, kind: input, shape index: {}]
  %s1 = inlined_call_operand.vmem [shape: f32[1,128], index: 1, kind: input, shape index: {}]
  %s2 = inlined_call_operand.hbm [shape: f32[2,128], index: 2, kind: output, shape index: {}]
  %s3 = sld [smem:[#allocation0]]
  $region22: #{tpu_custom_call.1} parent=0
    _
  %s5 = ssub.s32 1, %s3
  %s6 = scalar_select 0, %s5, %s3
  $region1: #{tpu_custom_call.1} parent=0
    #allocation2 [shape = 'u8[1024]{0}', space=vmem, size = 0x400, scoped, tag = 'input window, operand 0, single buffered']
    #allocation3 [shape = 's32[1]{0}', space=sflag, size = 0x4, scoped, tag = 'scoped memory for tpu_custom_call.1']
    #allocation4 [shape = 's32[1]{0}', space=sflag, size = 0x4, scoped, tag = 'scoped memory for tpu_custom_call.1']
    #allocation5 [shape = 'u8[1024]{0}', space=vmem, size = 0x400, scoped, tag = 'output window, operand 0, single buffered']
    %7 = vsyncpa [#allocation3], 0
    %8 = vsyncpa [#allocation4], 0
    // Predicated region
    $region2: #{tpu_custom_call.1} parent=1 // pred_check
      _
    $region3: #{tpu_custom_call.1} parent=1 // pred_check_branch
      %10 = sbr.rel (0) target = $region5
    $region4: #{tpu_custom_call.1} parent=1 // pred_region
      %s12 = ssub.s32 32, 32
      %13 = vsyncadd [#allocation3], %s12
      %s15 = sshll.u32 [#allocation2], 4
      %s16 = int_to_ptr.vmem [resolvable:$true] %s15
      %18 = dma.hbm_to_vmem [thread:$0]  %s0, 32, %s16, [#allocation3]
    $region5: #{tpu_custom_call.1} parent=1 // pred_fallthru
      _
    // Predicated region
    $region6: #{tpu_custom_call.1} parent=1 // pred_check
      _
    $region7: #{tpu_custom_call.1} parent=1 // pred_check_branch
      %20 = sbr.rel (0) target = $region9
    $region8: #{tpu_custom_call.1} parent=1 // pred_region
      _
    $region9: #{tpu_custom_call.1} parent=1 // pred_fallthru
      _
    // Predicated region
    $region10: #{tpu_custom_call.1} parent=1 // pred_check
      _
    $region11: #{tpu_custom_call.1} parent=1 // pred_check_branch
      %22 = sbr.rel (0) target = $region13
    $region12: #{tpu_custom_call.1} parent=1 // pred_region
      %23 = dma.done [#allocation3], 32
    $region13: #{tpu_custom_call.1} parent=1 // pred_fallthru
      _
    %v24 = vld [vmem:[#allocation2] sm:$0x3]
    %v25 = vld [vmem:[%s1] sm:$0x1]
    %v27 = vlaneseq
    %v28 = vshrl.u32 %v27, 7
    %v29 = vsub.s32 0, %v28
    %v30 = vrot.slane %v25, %v29
    %v32 = vmul.f32 %v24, %v30
    %33 = vst [vmem:[#allocation5] sm:$0x3] %v32
    // Predicated region
    $region14: #{tpu_custom_call.1} parent=1 // pred_check
      _
    $region15: #{tpu_custom_call.1} parent=1 // pred_check_branch
      %35 = sbr.rel (0) target = $region17
    $region16: #{tpu_custom_call.1} parent=1 // pred_region
      %s37 = ssub.s32 32, 32
      %38 = vsyncadd [#allocation4], %s37
      %s40 = sshll.u32 [#allocation5], 4
      %s41 = int_to_ptr.vmem [resolvable:$true] %s40
      %43 = dma.vmem_to_hbm [thread:$0]  %s41, 32, %s2, [#allocation4]
    $region17: #{tpu_custom_call.1} parent=1 // pred_fallthru
      _
    // Predicated region
    $region18: #{tpu_custom_call.1} parent=1 // pred_check
      _
    $region19: #{tpu_custom_call.1} parent=1 // pred_check_branch
      %45 = sbr.rel (0) target = $region21
    $region20: #{tpu_custom_call.1} parent=1 // pred_region
      %46 = dma.done [#allocation4], 32
    $region21: #{tpu_custom_call.1} parent=1 // pred_fallthru
      _
    %47 = vsyncpa [#allocation3], 1
    %48 = vsyncpa [#allocation4], 1

</llo_original>
